<compile_context>
chip_gen: v5e
topology: v5e:2x2
jax: 0.10.0
libtpu: 0.0.40
codegen_flags: <defaults>
</compile_context>

<pallas_src>
import math
from functools import partial, lru_cache

import numpy as np
import jax
import jax.numpy as jnp
from jax import lax
from jax.experimental import pallas as pl
from jax.experimental.pallas import tpu as pltpu


# ----------------------- config (a KANConv2DLayer instantiation) -------------
CFG = dict(
    input_dim=4, output_dim=8, groups=2, kernel_size=3, padding=1, stride=1,
    dilation=1, spline_order=3, grid_size=5, ndim=2,
    grid_range=(-1.0, 1.0), eps=1e-5, prelu_init=0.25,
)

SENTINEL = np.float32(-1.0e4)   # pad value << grid[0]: bases(SENTINEL)=0, GELU(SENTINEL)=0,
                                # i.e. identical to zero-padding the conv inputs (f32 math).
MXU_DTYPE = jnp.bfloat16        # bf16 MXU operands, f32 accumulation (native v5e/v6e/v7x).


def make_grid(cfg):
    gs, so = cfg["grid_size"], cfg["spline_order"]
    lo, hi = cfg["grid_range"]
    h = (hi - lo) / gs
    return np.linspace(lo - h * so, hi + h * so, gs + 2 * so + 1).astype(np.float32)


def _erf_f32(z):
    # Abramowitz & Stegun 7.1.26, |err| < 1.5e-7 (exact erf at f32 noise level).
    p = np.float32(0.3275911)
    a1 = np.float32(0.254829592); a2 = np.float32(-0.284496736)
    a3 = np.float32(1.421413741); a4 = np.float32(-1.453152027)
    a5 = np.float32(1.061405429)
    az = jnp.abs(z)
    t = 1.0 / (1.0 + p * az)
    poly = ((((a5 * t + a4) * t + a3) * t + a2) * t + a1) * t
    y_pos = 1.0 - poly * jnp.exp(-az * az)
    return jnp.where(z >= 0, y_pos, -y_pos)


@lru_cache(maxsize=1)
def _roll_matches_numpy():
    """Probe pltpu.roll's rotate direction once with a tiny kernel so the shift sign used
    in the conv kernel is correct for either convention."""
    def k(x_ref, o_ref):
        o_ref[...] = pltpu.roll(x_ref[...], 1, axis=1)
    x = jnp.arange(8 * 256, dtype=jnp.float32).reshape(8, 256)
    y = pl.pallas_call(k, out_shape=jax.ShapeDtypeStruct((8, 256), jnp.float32))(x)
    v = float(np.asarray(y[0, 0]))
    if v == float(np.asarray(x[0, 255])):
        return True          # np.roll convention: out[i] = x[(i - shift) % n]
    if v == float(np.asarray(x[0, 1])):
        return False         # opposite convention: out[i] = x[(i + shift) % n]
    return True              # fallback: assume np.roll convention


# ----------------------- the fused Pallas kernel ------------------------------
def kan_fused_kernel(x_ref, w_ref, mask_ref, alpha_ref, o_ref, rhs_ref, *,
                     grid_knots, spline_order, K, dil, Wp, Wflat, inv_cnt, eps,
                     PC, L, roll_is_np):
    # x_ref     : [P*C, Wflat]       f32  P samples stacked on rows (row = p*C + c),
    #                                     sentinel-padded flattened spatial plane.
    # w_ref     : [K*K, P*O, P*Ct]   bf16 sample+group block-diagonal base+spline weights
    # mask_ref  : [1, Wpad]          f32  1.0 on valid flat output columns
    # alpha_ref : [P*O, 1]           f32  PReLU slope per (sample, channel) row
    # o_ref     : [P*O, Wpad]        f32  (invalid columns hold garbage, stripped by glue)
    # rhs_ref   : [P*Ct, Wpad]       f32  scratch: rows [l*(P*C) : (l+1)*(P*C)] hold GELU
    #                                     (l=0) / basis level l-1 of all packed samples;
    #                                     columns >= Wflat are never written (they only
    #                                     reach masked / stripped output positions).
    x = x_ref[...]
    zero = np.float32(0.0)
    one = np.float32(1.0)

    # ---- exact GELU (erf-based, like torch.nn.GELU()) -> rhs rows [0, PC) ----
    gelu = np.float32(0.5) * x * (one + _erf_f32(x * np.float32(1.0 / math.sqrt(2.0))))
    rhs_ref[0:PC, 0:Wflat] = gelu

    # ---- B-spline bases (Cox-de Boor, same formulation as the torch module) --
    # order 0 from 12 shared comparisons: indicator_j = [x >= g_j] - [x >= g_{j+1}]
    g = [np.float32(v) for v in grid_knots]
    nk = len(g)
    f = [jnp.where(x >= g[j], one, zero) for j in range(nk)]
    bases = [f[j] - f[j + 1] for j in range(nk - 1)]
    # recursion with shared ratios: b_j <- r_j*b_j + (1 - r_{j+1})*b_{j+1},
    # r_j = (x - g_j) / (g_{j+k} - g_j)  (torch's delta==0 guard resolved at trace time;
    # never triggers for a uniform grid).
    for k in range(1, spline_order + 1):
        nb = len(bases)                                    # = nk - k
        r = []
        for j in range(nb):
            den = g[j + k] - g[j]
            inv = one if den == 0.0 else np.float32(1.0 / den)
            r.append((x - g[j]) * inv)
        bases = [r[j] * bases[j] + (one - r[j + 1]) * bases[j + 1]
                 for j in range(nb - 1)]
    for l in range(L):
        rhs_ref[PC * (1 + l):PC * (2 + l), 0:Wflat] = bases[l]

    # ---- base + spline conv for all groups & both packed samples -------------
    # one f32->bf16 cast per step; per tap one full-width MXU matmul, shift applied to
    # the OUTPUT with pltpu.roll (XLU).  Wrapped/tail columns land only at positions >= Q.
    rhs = rhs_ref[...].astype(MXU_DTYPE)                   # [P*Ct, Wpad] bf16
    PO, Wpad = o_ref.shape
    acc = jnp.zeros((PO, Wpad), jnp.float32)
    for kh in range(K):
        for kw in range(K):
            s = kh * dil * Wp + kw * dil
            full = jnp.dot(w_ref[kh * K + kw], rhs,
                           preferred_element_type=jnp.float32)
            if s:
                shift = (Wpad - s) if roll_is_np else s    # roll LEFT by s
                full = pltpu.roll(full, shift, axis=1)
            acc = acc + full

    # ---- InstanceNorm2d(affine=False): masked two-pass mean/var, then PReLU --
    valid = mask_ref[...] > np.float32(0.5)                # [1, Wpad]
    mean = jnp.sum(jnp.where(valid, acc, zero), axis=-1, keepdims=True) * np.float32(inv_cnt)
    dev = jnp.where(valid, acc - mean, zero)
    var = jnp.sum(dev * dev, axis=-1, keepdims=True) * np.float32(inv_cnt)   # biased (torch)
    z = (acc - mean) * lax.rsqrt(var + np.float32(eps))
    a = alpha_ref[...]                                     # [P*O, 1]
    o_ref[...] = jnp.where(z >= zero, z, a * z)


# ----------------------- host-side constant packing (runs ONCE, NumPy) --------
def prepare_constants(params, grid_np, cfg, H, W, P):
    G = cfg["groups"]; C = cfg["input_dim"]; Otot = cfg["output_dim"]
    Cg, Og = C // G, Otot // G
    K = cfg["kernel_size"]; pad = cfg["padding"]; dil = cfg["dilation"]
    st = cfg["stride"]; L = cfg["grid_size"] + cfg["spline_order"]
    assert st == 1, "fused shift-and-matmul conv implemented for stride=1"
    Hp, Wp = H + 2 * pad, W + 2 * pad
    Ho = (H + 2 * pad - dil * (K - 1) - 1) // st + 1
    Wo = (W + 2 * pad - dil * (K - 1) - 1) // st + 1
    Wflat = Hp * Wp
    Wpad = ((Wflat + 127) // 128) * 128                    # lane-dense output width
    Ct = (1 + L) * C

    # sample+group block-diagonal weight, rhs-row layout: row = lvl*(P*C) + p*C + c,
    # lvl 0 = GELU, lvl 1+l = basis level l.  Spline conv input layout in torch is
    # channel-major / level-minor (c*L + l).
    W2 = np.zeros((K * K, P * Otot, P * Ct), np.float32)
    alpha = np.zeros((P * Otot, 1), np.float32)
    for pidx in range(P):
        for gi in range(G):
            bw = np.asarray(params["base_w"][gi])                          # [Og, Cg, K, K]
            sw = np.asarray(params["spline_w"][gi]).reshape(Og, Cg, L, K, K)
            orows = slice(pidx * Otot + gi * Og, pidx * Otot + (gi + 1) * Og)
            alpha[orows, 0] = float(np.asarray(params["prelu_w"][gi]).reshape(()))
            for kh in range(K):
                for kw in range(K):
                    t = kh * K + kw
                    c0 = pidx * C + gi * Cg
                    W2[t, orows, c0:c0 + Cg] = bw[:, :, kh, kw]
                    for l in range(L):
                        r0 = (1 + l) * (P * C) + pidx * C + gi * Cg
                        W2[t, orows, r0:r0 + Cg] = sw[:, :, l, kh, kw]

    q = np.arange(Wpad)
    mask = (((q % Wp) < Wo) & (q < Ho * Wp)).astype(np.float32)[None, :]

    return dict(
        W2=jnp.asarray(W2, dtype=MXU_DTYPE),
        alpha=jnp.asarray(alpha),
        mask=jnp.asarray(mask),
        grid_knots=tuple(float(v) for v in grid_np),
        P=P, Hp=Hp, Wp=Wp, Ho=Ho, Wo=Wo, Wflat=Wflat, Wpad=Wpad, Ct=Ct,
    )


# ----------------------- forward wrapper --------------------------------------
def kan_conv2d_forward(x, consts, cfg):
    N, C, H, W = x.shape
    P = consts["P"]
    Otot = cfg["output_dim"]; K = cfg["kernel_size"]; pad = cfg["padding"]
    dil = cfg["dilation"]; L = cfg["grid_size"] + cfg["spline_order"]
    Hp, Wp, Ho, Wo = consts["Hp"], consts["Wp"], consts["Ho"], consts["Wo"]
    Wflat, Wpad, Ct = consts["Wflat"], consts["Wpad"], consts["Ct"]
    assert N % P == 0 and Hp == H + 2 * pad and Wp == W + 2 * pad
    NB = N // P
    PC, PCt, PO = P * C, P * Ct, P * Otot

    # spatial pad with the sentinel, flatten, pack P samples per grid step (row = p*C + c)
    xp = jnp.pad(x, ((0, 0), (0, 0), (pad, pad), (pad, pad)),
                 constant_values=SENTINEL).reshape(NB, PC, Wflat)

    kern = partial(
        kan_fused_kernel,
        grid_knots=consts["grid_knots"], spline_order=cfg["spline_order"],
        K=K, dil=dil, Wp=Wp, Wflat=Wflat, inv_cnt=1.0 / float(Ho * Wo),
        eps=cfg["eps"], PC=PC, L=L, roll_is_np=_roll_matches_numpy())

    out = pl.pallas_call(
        kern,
        out_shape=jax.ShapeDtypeStruct((NB, PO, Wpad), jnp.float32),
        grid=(NB,),
        in_specs=[
            pl.BlockSpec((None, PC, Wflat), lambda n: (n, 0, 0)),   # packed padded x
            pl.BlockSpec((K * K, PO, PCt), lambda n: (0, 0, 0)),    # combined weights
            pl.BlockSpec((1, Wpad), lambda n: (0, 0)),              # valid-column mask
            pl.BlockSpec((PO, 1), lambda n: (0, 0)),                # PReLU slopes
        ],
        out_specs=pl.BlockSpec((None, PO, Wpad), lambda n: (n, 0, 0)),
        scratch_shapes=[pltpu.VMEM((PCt, Wpad), jnp.float32)],
        compiler_params=pltpu.CompilerParams(dimension_semantics=("parallel",)),
    )(xp, consts["W2"], consts["mask"], consts["alpha"])

    # strip flat padded-domain layout: [NB, P*O, Wpad] -> [N, O, Ho, Wo] (no pad pass)
    y = out.reshape(N, Otot, Wpad)[:, :, :Ho * Wp]
    return y.reshape(N, Otot, Ho, Wp)[:, :, :, :Wo]


# ----------------------- deterministic parameter init ------------------------
def init_params(key, cfg):
    G = cfg["groups"]
    Cg = cfg["input_dim"] // G
    Og = cfg["output_dim"] // G
    K = cfg["kernel_size"]
    L = cfg["grid_size"] + cfg["spline_order"]
    base_w, spline_w, prelu_w = [], [], []
    keys = jax.random.split(key, 2 * G)
    for g in range(G):
        bnd_b = math.sqrt(3.0 / (Cg * K * K))            # kaiming_uniform, gain('linear')=1
        base_w.append(jax.random.uniform(keys[2 * g], (Og, Cg, K, K),
                                         minval=-bnd_b, maxval=bnd_b, dtype=jnp.float32))
        bnd_s = math.sqrt(3.0 / (Cg * L * K * K))
        spline_w.append(jax.random.uniform(keys[2 * g + 1], (Og, Cg * L, K, K),
                                           minval=-bnd_s, maxval=bnd_s, dtype=jnp.float32))
        prelu_w.append(jnp.full((1, 1), cfg["prelu_init"], dtype=jnp.float32))
    return dict(base_w=base_w, spline_w=spline_w, prelu_w=prelu_w)


# ----------------------- pure-JAX reference (correctness check) --------------
def ref_forward(x, params, grid_np, cfg):
    G = cfg["groups"]; Cg = cfg["input_dim"] // G
    K, pad, st, dil = cfg["kernel_size"], cfg["padding"], cfg["stride"], cfg["dilation"]
    so = cfg["spline_order"]; L = cfg["grid_size"] + so
    grid_t = jnp.asarray(grid_np)
    dn = ("NCHW", "OIHW", "NCHW")
    outs = []
    for g in range(G):
        xg = x[:, g * Cg:(g + 1) * Cg]
        base_out = lax.conv_general_dilated(
            jax.nn.gelu(xg, approximate=False), params["base_w"][g], (st, st),
            [(pad, pad), (pad, pad)], rhs_dilation=(dil, dil),
            dimension_numbers=dn, precision=lax.Precision.HIGHEST)
        xu = xg[..., None]
        bases = ((xu >= grid_t[:-1]) & (xu < grid_t[1:])).astype(x.dtype)
        for k in range(1, so + 1):
            left = grid_t[:-(k + 1)]; right = grid_t[k:-1]
            delta = jnp.where(right == left, jnp.ones_like(right), right - left)
            bases = ((xu - left) / delta * bases[..., :-1]
                     + (grid_t[k + 1:] - xu) / (grid_t[k + 1:] - grid_t[1:-k]) * bases[..., 1:])
        N, _, H, W = xg.shape
        bases = jnp.moveaxis(bases, -1, 2).reshape(N, Cg * L, H, W)
        spline_out = lax.conv_general_dilated(
            bases, params["spline_w"][g], (st, st), [(pad, pad), (pad, pad)],
            rhs_dilation=(dil, dil), dimension_numbers=dn, precision=lax.Precision.HIGHEST)
        y = base_out + spline_out
        mean = y.mean(axis=(2, 3), keepdims=True)
        var = ((y - mean) ** 2).mean(axis=(2, 3), keepdims=True)
        z = (y - mean) / jnp.sqrt(var + cfg["eps"])
        a = params["prelu_w"][g][0, 0]
        outs.append(jnp.where(z >= 0, z, a * z))
    return jnp.concatenate(outs, axis=1)


# ----------------------- main -------------------------------------------------
if __name__ == "__main__":
    key = jax.random.PRNGKey(0)
    kx, kp = jax.random.split(key)
    N, H, W = 2, 16, 16
    x = jax.random.normal(kx, (N, CFG["input_dim"], H, W), dtype=jnp.float32)

    grid_np = make_grid(CFG)
    params = init_params(kp, CFG)

    _roll_matches_numpy()                         # probe the roll convention once, eagerly
    P = 2 if N % 2 == 0 else 1                    # pack 2 samples/step when batch allows
    consts = prepare_constants(params, grid_np, CFG, H, W, P)   # hoisted out of the jit path

    fwd = jax.jit(lambda xx: kan_conv2d_forward(xx, consts, CFG))
    out = jax.block_until_ready(fwd(x))
    assert out.shape == (N, CFG["output_dim"], H, W), out.shape

    ref = jax.block_until_ready(ref_forward(x, params, grid_np, CFG))
    # tolerance covers the bf16 MXU operands (f32 accumulation) used on v6e/v7x
    np.testing.assert_allclose(np.asarray(out), np.asarray(ref), rtol=2e-2, atol=2e-2)

    print("KERNEL_OK")
</pallas_src>

<mosaic_0001>
module attributes {stable_mosaic.version = 11 : i64} {
  func.func @k(%arg0: memref<8x256xf32, #tpu.memory_space<vmem>>, %arg1: memref<8x256xf32, #tpu.memory_space<vmem>>) attributes {dimension_semantics = [], scalar_prefetch = 0 : i64, scratch_operands = 0 : i64, tpu.core_type = #tpu.core_type<tc>} {
    %c0 = arith.constant 0 : index
    %c0_0 = arith.constant 0 : index
    %0 = vector.load %arg0[%c0, %c0_0] : memref<8x256xf32, #tpu.memory_space<vmem>>, vector<8x256xf32>
    %c1_i32 = arith.constant 1 : i32
    %1 = tpu.dynamic_rotate %0 by %c1_i32 dim 1 : vector<8x256xf32>, i32 -> vector<8x256xf32>
    %c0_1 = arith.constant 0 : index
    %c0_2 = arith.constant 0 : index
    %2 = vector.load %arg1[%c0_1, %c0_2] : memref<8x256xf32, #tpu.memory_space<vmem>>, vector<8x256xf32>
    tpu.vector_store %arg1[%c0_1, %c0_2], %1 {strides = array<i32>} : memref<8x256xf32, #tpu.memory_space<vmem>>, vector<8x256xf32>,
    return
  }
}

</mosaic_0001>

<llo_original>
// kernel: tpu_custom_call.1
$region0: #{tpu_custom_call.1}
  #allocation0 [shape = 'u32[]', space=smem, size = 0x4, offset = 0x4, fixed_abs, tag = 'smem constant byte address 0x4 - core index']
  #allocation1 [shape = 'u32[72,128]{1,0:T(1,128)}', space=vmem, size = 0x9000, scoped, tag = 'internal scratch']
  %s0 = inlined_call_operand.hbm [shape: f32[8,256], index: 0, kind: input, shape index: {}]
  %s1 = inlined_call_operand.hbm [shape: f32[8,256], index: 1, kind: output, shape index: {}]
  %s2 = sld [smem:[#allocation0]]
  $region18: #{tpu_custom_call.1} parent=0
    _
  %s4 = ssub.s32 1, %s2
  %s5 = scalar_select 0, %s4, %s2
  $region1: #{tpu_custom_call.1} parent=0
    #allocation2 [shape = 'u8[8192]{0}', space=vmem, size = 0x2000, scoped, tag = 'input window, operand 0, single buffered']
    #allocation3 [shape = 's32[1]{0}', space=sflag, size = 0x4, scoped, tag = 'scoped memory for tpu_custom_call.1']
    #allocation4 [shape = 's32[1]{0}', space=sflag, size = 0x4, scoped, tag = 'scoped memory for tpu_custom_call.1']
    #allocation5 [shape = 'u8[8192]{0}', space=vmem, size = 0x2000, scoped, tag = 'output window, operand 0, single buffered']
    %6 = vsyncpa [#allocation3], 0
    %7 = vsyncpa [#allocation4], 0
    // Predicated region
    $region2: #{tpu_custom_call.1} parent=1 // pred_check
      _
    $region3: #{tpu_custom_call.1} parent=1 // pred_check_branch
      %9 = sbr.rel (0) target = $region5
    $region4: #{tpu_custom_call.1} parent=1 // pred_region
      %11 = vsyncadd [#allocation3], 0
      %s13 = sshll.u32 %s0, 4
      %s14 = int_to_ptr.hbm [resolvable:$true] %s13
      %s15 = sshll.u32 [#allocation2], 4
      %s16 = int_to_ptr.vmem [resolvable:$true] %s15
      %18 = dma.hbm_to_vmem [thread:$0]  %s14, 256, %s16, [#allocation3]
    $region5: #{tpu_custom_call.1} parent=1 // pred_fallthru
      _
    // Predicated region
    $region6: #{tpu_custom_call.1} parent=1 // pred_check
      _
    $region7: #{tpu_custom_call.1} parent=1 // pred_check_branch
      %20 = sbr.rel (0) target = $region9
    $region8: #{tpu_custom_call.1} parent=1 // pred_region
      %22 = dma.done [#allocation3], 256
    $region9: #{tpu_custom_call.1} parent=1 // pred_fallthru
      _
    %v23 = vld [vmem:[#allocation2] sm:$0xff]
    %v24 = vld [vmem:[#allocation2 + $0x8] sm:$0xff]
    %25 = vrot.lane.b32.xlu0 %v23, 1
    %v26 = vpop.permute.xlu0 %25
    %27 = vrot.lane.b32.xlu0 %v24, 1
    %v28 = vpop.permute.xlu0 %27
    %v29 = vlaneseq
    %v30 = vand.u32 %v29, 127
    %vm31 = vcmp.lt.s32.totalorder %v30, 1
    %v32 = vsel %vm31, %v26, %v28
    %v33 = vsel %vm31, %v28, %v26
    %34 = vst [vmem:[#allocation5] sm:$0xff] %v33
    %35 = vst [vmem:[#allocation5 + $0x8] sm:$0xff] %v32
    // Predicated region
    $region10: #{tpu_custom_call.1} parent=1 // pred_check
      _
    $region11: #{tpu_custom_call.1} parent=1 // pred_check_branch
      %37 = sbr.rel (0) target = $region13
    $region12: #{tpu_custom_call.1} parent=1 // pred_region
      %39 = vsyncadd [#allocation4], 0
      %s41 = sshll.u32 [#allocation5], 4
      %s42 = int_to_ptr.vmem [resolvable:$true] %s41
      %s43 = sshll.u32 %s1, 4
      %s44 = int_to_ptr.hbm [resolvable:$true] %s43
      %46 = dma.vmem_to_hbm [thread:$0]  %s42, 256, %s44, [#allocation4]
    $region13: #{tpu_custom_call.1} parent=1 // pred_fallthru
      _
    // Predicated region
    $region14: #{tpu_custom_call.1} parent=1 // pred_check
      _
    $region15: #{tpu_custom_call.1} parent=1 // pred_check_branch
      %48 = sbr.rel (0) target = $region17
    $region16: #{tpu_custom_call.1} parent=1 // pred_region
      %50 = dma.done [#allocation4], 256
    $region17: #{tpu_custom_call.1} parent=1 // pred_fallthru
      _
    %51 = vsyncpa [#allocation3], 1
    %52 = vsyncpa [#allocation4], 1

</llo_original>
